<compile_context>
chip_gen: v7x
topology: tpu7x:2x2x1
jax: 0.10.0
libtpu: 0.0.40
codegen_flags: <defaults>
</compile_context>

<pallas_src>
import jax
import jax.numpy as jnp
from jax.experimental import pallas as pl
from jax.experimental.pallas import tpu as pltpu

N_CH = 4            # conv channels (module default 10; small for the demo)
L = 40              # lattice size -- fixed by the architecture (20*20 after pool)
BN_EPS = 1e-5
BATCH_TILE_CAP = 512


def ising_tile_kernel(taps_ref, w_ref, cb_ref, fcw_ref, o_ref):
    """Per batch tile: conv(k=2,pad=1)+bias+ReLU+maxpool2, then per-sample FC
    partial dots and per-sample BatchNorm sum / sum-of-squares.

    taps_ref : (9, TB, 400) bf16   9 stride-2 shifted slabs of the padded input
    w_ref    : (4*N,) f32 SMEM     conv weights, ordered (c, di, dj)
    cb_ref   : (N,)   f32 SMEM     conv bias
    fcw_ref  : (2*N, 400) f32      fc weight rows; row j*N + c
    o_ref    : (TB, 4*N) f32       columns: [p0_c | p1_c | sum_c | sumsq_c]
    """
    n_ch = cb_ref.shape[0]

    # Load each tap once (bf16 -> f32); reused across all 4 pool-window
    # positions and all channels (9 loads instead of 16 per channel).
    taps = [taps_ref[i].astype(jnp.float32) for i in range(9)]

    p0s, p1s, ss, sqs = [], [], [], []
    for c in range(n_ch):                  # static unroll (N small); channel
        w00 = w_ref[4 * c + 0]             # c's XLU reductions overlap channel
        w01 = w_ref[4 * c + 1]             # c+1's VALU conv work.
        w10 = w_ref[4 * c + 2]
        w11 = w_ref[4 * c + 3]

        pooled = None
        for a in range(2):                 # 2x2 max-pool window positions
            for bb in range(2):
                conv = (taps[3 * a + bb] * w00
                        + taps[3 * a + bb + 1] * w01
                        + taps[3 * (a + 1) + bb] * w10
                        + taps[3 * (a + 1) + bb + 1] * w11)
                pooled = conv if pooled is None else jnp.maximum(pooled, conv)
        # bias-add and ReLU commute with the window max -> once per channel
        pooled = jnp.maximum(pooled + cb_ref[c], 0.0)           # (TB, 400)

        # Per-sample FC partial dots (independent of global BN stats -> makes
        # the batch-parallel grid legal; BN affine is folded in the epilogue).
        p0s.append(jnp.sum(pooled * fcw_ref[c], axis=1, keepdims=True))
        p1s.append(jnp.sum(pooled * fcw_ref[n_ch + c], axis=1, keepdims=True))
        # Per-sample BatchNorm statistics contributions.
        ss.append(jnp.sum(pooled, axis=1, keepdims=True))
        sqs.append(jnp.sum(pooled * pooled, axis=1, keepdims=True))

    # Single store of all per-sample columns for this tile.
    o_ref[...] = jnp.concatenate(p0s + p1s + ss + sqs, axis=1)


def _pick_batch_tile(b, cap=BATCH_TILE_CAP):
    """Largest batch tile <= cap that divides B; tiles smaller than the full
    batch must be 8-aligned (sublane constraint)."""
    if b <= cap:
        return b
    start = cap - (cap % 8)
    for tb in range(start, 7, -8):
        if b % tb == 0:
            return tb
    return b      # fall back to one big tile (always layout-legal)


def ising_forward(x, conv_w, conv_b, bn_gamma, bn_beta, fc_w, fc_b):
    b = x.shape[0]
    n_ch = conv_w.shape[0]
    x = x.astype(jnp.float32)                        # torch .float()

    # Layout plumbing (XLA): zero-pad (padding=1) and extract the 9 stride-2
    # shifted tap slabs, spatially flattened to lane-dense (B, 400).
    # pool output (p,q), pool offset (a,bb), conv tap (di,dj) reads
    #   xpad[2p + a + di, 2q + bb + dj] == taps[(a+di)*3 + (bb+dj)][p*20 + q].
    xpad = jnp.pad(x, ((0, 0), (1, 1), (1, 1)))      # (B, 42, 42)
    taps = jnp.stack(
        [xpad[:, r:r + 40:2, s:s + 40:2].reshape(b, 400)
         for r in range(3) for s in range(3)], axis=0)            # (9, B, 400)
    taps = taps.astype(jnp.bfloat16)                 # +-1 / 0 exact; halves DMA

    w_flat = conv_w.reshape(-1).astype(jnp.float32)              # (4N,) (c,di,dj)
    fcw = fc_w.reshape(2, n_ch, 400).reshape(2 * n_ch, 400)      # row j*N + c
    fcw = fcw.astype(jnp.float32)

    tb = _pick_batch_tile(b)
    grid = (b // tb,)

    cols = pl.pallas_call(
        ising_tile_kernel,
        out_shape=jax.ShapeDtypeStruct((b, 4 * n_ch), jnp.float32),
        grid=grid,
        in_specs=[
            pl.BlockSpec((9, tb, 400), lambda i: (0, i, 0)),          # taps
            pl.BlockSpec(memory_space=pltpu.MemorySpace.SMEM),        # conv w
            pl.BlockSpec(memory_space=pltpu.MemorySpace.SMEM),        # conv b
            pl.BlockSpec((2 * n_ch, 400), lambda i: (0, 0)),          # fc w
        ],
        out_specs=pl.BlockSpec((tb, 4 * n_ch), lambda i: (i, 0)),
        compiler_params=pltpu.CompilerParams(
            dimension_semantics=("parallel",)),      # per-tile outputs -> legal
    )(taps, w_flat, conv_b.astype(jnp.float32), fcw)

    # Tiny O(B*N) epilogue: global BN stats, folded BN affine, log_softmax.
    part = cols[:, :2 * n_ch].reshape(b, 2, n_ch)    # per-sample FC partials
    samp_sum = cols[:, 2 * n_ch:3 * n_ch]            # (B, N)
    samp_sq = cols[:, 3 * n_ch:]                     # (B, N)
    count = float(b * 400)                           # BN over (B, 20, 20)
    mu = jnp.sum(samp_sum, axis=0) / count
    var = jnp.sum(samp_sq, axis=0) / count - mu * mu # biased train-mode var
    scale = bn_gamma * jax.lax.rsqrt(var + BN_EPS)
    shift = bn_beta - mu * scale
    fcw_rowsum = fc_w.reshape(2, n_ch, 400).sum(-1)  # (2, N)
    logits = (jnp.einsum('bjc,c->bj', part, scale)
              + (fcw_rowsum @ shift)[None, :] + fc_b[None, :])
    return jax.nn.log_softmax(logits, axis=1)


def reference_forward(x, conv_w, conv_b, bn_gamma, bn_beta, fc_w, fc_b):
    """Pure-JAX reference mirroring the torch forward (train-mode BatchNorm)."""
    xi = x.astype(jnp.float32)[:, None, :, :]
    conv = jax.lax.conv_general_dilated(
        xi, conv_w, window_strides=(1, 1), padding=((1, 1), (1, 1)),
        dimension_numbers=('NCHW', 'OIHW', 'NCHW'))
    conv = conv + conv_b[None, :, None, None]
    r = jnp.maximum(conv, 0.0)
    p = jax.lax.reduce_window(r, -jnp.inf, jax.lax.max,
                              (1, 1, 2, 2), (1, 1, 2, 2), 'VALID')
    mu = jnp.mean(p, axis=(0, 2, 3), keepdims=True)
    var = jnp.mean((p - mu) ** 2, axis=(0, 2, 3), keepdims=True)
    pn = (p - mu) / jnp.sqrt(var + BN_EPS)
    pn = pn * bn_gamma[None, :, None, None] + bn_beta[None, :, None, None]
    flat = pn.reshape(x.shape[0], -1)
    logits = flat @ fc_w.T + fc_b
    return jax.nn.log_softmax(logits, axis=1)


if __name__ == "__main__":
    key = jax.random.PRNGKey(0)
    k1, k2, k3, k4, k5 = jax.random.split(key, 5)
    B = 2   # demo size; for honest perf numbers use B a multiple of 8 (>=512)
    # Ising spin configurations (+-1), float for the conv
    x = jnp.sign(jax.random.normal(k1, (B, L, L), dtype=jnp.float32))

    # deterministic synthetic parameters (shapes match nn.Conv2d/BatchNorm2d/Linear)
    conv_w = jax.random.normal(k2, (N_CH, 1, 2, 2), dtype=jnp.float32) * 0.5
    conv_b = jax.random.normal(k3, (N_CH,), dtype=jnp.float32) * 0.1
    bn_gamma = jnp.ones((N_CH,), jnp.float32)     # nn.BatchNorm2d default init
    bn_beta = jnp.zeros((N_CH,), jnp.float32)
    fc_w = jax.random.normal(k4, (2, 400 * N_CH), dtype=jnp.float32) * 0.02
    fc_b = jax.random.normal(k5, (2,), dtype=jnp.float32) * 0.1

    fwd = jax.jit(ising_forward)
    out = jax.block_until_ready(fwd(x, conv_w, conv_b, bn_gamma, bn_beta, fc_w, fc_b))

    ref = reference_forward(x, conv_w, conv_b, bn_gamma, bn_beta, fc_w, fc_b)
    assert out.shape == (B, 2)
    assert jnp.allclose(out, ref, atol=1e-3, rtol=1e-3)
    print("KERNEL_OK")
</pallas_src>

<mosaic_0001>
module attributes {stable_mosaic.version = 11 : i64} {
  func.func @ising_tile_kernel(%arg0: i32, %arg1: memref<9x2x400xbf16, #tpu.memory_space<vmem>>, %arg2: memref<16xf32, #tpu.memory_space<smem>>, %arg3: memref<4xf32, #tpu.memory_space<smem>>, %arg4: memref<8x400xf32, #tpu.memory_space<vmem>>, %arg5: memref<2x16xf32, #tpu.memory_space<vmem>>) attributes {dimension_semantics = [#tpu.dimension_semantics<parallel>], iteration_bounds = array<i64: 1>, scalar_prefetch = 0 : i64, scratch_operands = 0 : i64, tpu.core_type = #tpu.core_type<tc>, window_params = [{transform_indices = @transform_0, window_bounds = array<i64: 9, 2, 400>}, {transform_indices = @transform_1, window_bounds = array<i64: 16>}, {transform_indices = @transform_2, window_bounds = array<i64: 4>}, {pipeline_mode = #tpu.pipeline_mode<synchronous>, transform_indices = @transform_3, window_bounds = array<i64: 8, 400>}, {transform_indices = @transform_4, window_bounds = array<i64: 2, 16>}]} {
    %c0 = arith.constant 0 : index
    %c0_0 = arith.constant 0 : index
    %c0_1 = arith.constant 0 : index
    %0 = vector.load %arg1[%c0, %c0_0, %c0_1] : memref<9x2x400xbf16, #tpu.memory_space<vmem>>, vector<1x2x400xbf16>
    %1 = vector.shape_cast %0 : vector<1x2x400xbf16> to vector<2x400xbf16>
    %2 = arith.extf %1 : vector<2x400xbf16> to vector<2x400xf32>
    %c1 = arith.constant 1 : index
    %c0_2 = arith.constant 0 : index
    %c0_3 = arith.constant 0 : index
    %3 = vector.load %arg1[%c1, %c0_2, %c0_3] : memref<9x2x400xbf16, #tpu.memory_space<vmem>>, vector<1x2x400xbf16>
    %4 = vector.shape_cast %3 : vector<1x2x400xbf16> to vector<2x400xbf16>
    %5 = arith.extf %4 : vector<2x400xbf16> to vector<2x400xf32>
    %c2 = arith.constant 2 : index
    %c0_4 = arith.constant 0 : index
    %c0_5 = arith.constant 0 : index
    %6 = vector.load %arg1[%c2, %c0_4, %c0_5] : memref<9x2x400xbf16, #tpu.memory_space<vmem>>, vector<1x2x400xbf16>
    %7 = vector.shape_cast %6 : vector<1x2x400xbf16> to vector<2x400xbf16>
    %8 = arith.extf %7 : vector<2x400xbf16> to vector<2x400xf32>
    %c3 = arith.constant 3 : index
    %c0_6 = arith.constant 0 : index
    %c0_7 = arith.constant 0 : index
    %9 = vector.load %arg1[%c3, %c0_6, %c0_7] : memref<9x2x400xbf16, #tpu.memory_space<vmem>>, vector<1x2x400xbf16>
    %10 = vector.shape_cast %9 : vector<1x2x400xbf16> to vector<2x400xbf16>
    %11 = arith.extf %10 : vector<2x400xbf16> to vector<2x400xf32>
    %c4 = arith.constant 4 : index
    %c0_8 = arith.constant 0 : index
    %c0_9 = arith.constant 0 : index
    %12 = vector.load %arg1[%c4, %c0_8, %c0_9] : memref<9x2x400xbf16, #tpu.memory_space<vmem>>, vector<1x2x400xbf16>
    %13 = vector.shape_cast %12 : vector<1x2x400xbf16> to vector<2x400xbf16>
    %14 = arith.extf %13 : vector<2x400xbf16> to vector<2x400xf32>
    %c5 = arith.constant 5 : index
    %c0_10 = arith.constant 0 : index
    %c0_11 = arith.constant 0 : index
    %15 = vector.load %arg1[%c5, %c0_10, %c0_11] : memref<9x2x400xbf16, #tpu.memory_space<vmem>>, vector<1x2x400xbf16>
    %16 = vector.shape_cast %15 : vector<1x2x400xbf16> to vector<2x400xbf16>
    %17 = arith.extf %16 : vector<2x400xbf16> to vector<2x400xf32>
    %c6 = arith.constant 6 : index
    %c0_12 = arith.constant 0 : index
    %c0_13 = arith.constant 0 : index
    %18 = vector.load %arg1[%c6, %c0_12, %c0_13] : memref<9x2x400xbf16, #tpu.memory_space<vmem>>, vector<1x2x400xbf16>
    %19 = vector.shape_cast %18 : vector<1x2x400xbf16> to vector<2x400xbf16>
    %20 = arith.extf %19 : vector<2x400xbf16> to vector<2x400xf32>
    %c7 = arith.constant 7 : index
    %c0_14 = arith.constant 0 : index
    %c0_15 = arith.constant 0 : index
    %21 = vector.load %arg1[%c7, %c0_14, %c0_15] : memref<9x2x400xbf16, #tpu.memory_space<vmem>>, vector<1x2x400xbf16>
    %22 = vector.shape_cast %21 : vector<1x2x400xbf16> to vector<2x400xbf16>
    %23 = arith.extf %22 : vector<2x400xbf16> to vector<2x400xf32>
    %c8 = arith.constant 8 : index
    %c0_16 = arith.constant 0 : index
    %c0_17 = arith.constant 0 : index
    %24 = vector.load %arg1[%c8, %c0_16, %c0_17] : memref<9x2x400xbf16, #tpu.memory_space<vmem>>, vector<1x2x400xbf16>
    %25 = vector.shape_cast %24 : vector<1x2x400xbf16> to vector<2x400xbf16>
    %26 = arith.extf %25 : vector<2x400xbf16> to vector<2x400xf32>
    %c0_18 = arith.constant 0 : index
    %27 = memref.load %arg2[%c0_18] : memref<16xf32, #tpu.memory_space<smem>>
    %c1_19 = arith.constant 1 : index
    %28 = memref.load %arg2[%c1_19] : memref<16xf32, #tpu.memory_space<smem>>
    %c2_20 = arith.constant 2 : index
    %29 = memref.load %arg2[%c2_20] : memref<16xf32, #tpu.memory_space<smem>>
    %c3_21 = arith.constant 3 : index
    %30 = memref.load %arg2[%c3_21] : memref<16xf32, #tpu.memory_space<smem>>
    %31 = vector.broadcast %27 : f32 to vector<2x400xf32>
    %32 = arith.mulf %2, %31 : vector<2x400xf32>
    %33 = vector.broadcast %28 : f32 to vector<2x400xf32>
    %34 = arith.mulf %5, %33 : vector<2x400xf32>
    %35 = arith.addf %32, %34 : vector<2x400xf32>
    %36 = vector.broadcast %29 : f32 to vector<2x400xf32>
    %37 = arith.mulf %11, %36 : vector<2x400xf32>
    %38 = arith.addf %35, %37 : vector<2x400xf32>
    %39 = vector.broadcast %30 : f32 to vector<2x400xf32>
    %40 = arith.mulf %14, %39 : vector<2x400xf32>
    %41 = arith.addf %38, %40 : vector<2x400xf32>
    %42 = vector.broadcast %27 : f32 to vector<2x400xf32>
    %43 = arith.mulf %5, %42 : vector<2x400xf32>
    %44 = vector.broadcast %28 : f32 to vector<2x400xf32>
    %45 = arith.mulf %8, %44 : vector<2x400xf32>
    %46 = arith.addf %43, %45 : vector<2x400xf32>
    %47 = vector.broadcast %29 : f32 to vector<2x400xf32>
    %48 = arith.mulf %14, %47 : vector<2x400xf32>
    %49 = arith.addf %46, %48 : vector<2x400xf32>
    %50 = vector.broadcast %30 : f32 to vector<2x400xf32>
    %51 = arith.mulf %17, %50 : vector<2x400xf32>
    %52 = arith.addf %49, %51 : vector<2x400xf32>
    %53 = arith.maximumf %41, %52 : vector<2x400xf32>
    %54 = vector.broadcast %27 : f32 to vector<2x400xf32>
    %55 = arith.mulf %11, %54 : vector<2x400xf32>
    %56 = vector.broadcast %28 : f32 to vector<2x400xf32>
    %57 = arith.mulf %14, %56 : vector<2x400xf32>
    %58 = arith.addf %55, %57 : vector<2x400xf32>
    %59 = vector.broadcast %29 : f32 to vector<2x400xf32>
    %60 = arith.mulf %20, %59 : vector<2x400xf32>
    %61 = arith.addf %58, %60 : vector<2x400xf32>
    %62 = vector.broadcast %30 : f32 to vector<2x400xf32>
    %63 = arith.mulf %23, %62 : vector<2x400xf32>
    %64 = arith.addf %61, %63 : vector<2x400xf32>
    %65 = arith.maximumf %53, %64 : vector<2x400xf32>
    %66 = vector.broadcast %27 : f32 to vector<2x400xf32>
    %67 = arith.mulf %14, %66 : vector<2x400xf32>
    %68 = vector.broadcast %28 : f32 to vector<2x400xf32>
    %69 = arith.mulf %17, %68 : vector<2x400xf32>
    %70 = arith.addf %67, %69 : vector<2x400xf32>
    %71 = vector.broadcast %29 : f32 to vector<2x400xf32>
    %72 = arith.mulf %23, %71 : vector<2x400xf32>
    %73 = arith.addf %70, %72 : vector<2x400xf32>
    %74 = vector.broadcast %30 : f32 to vector<2x400xf32>
    %75 = arith.mulf %26, %74 : vector<2x400xf32>
    %76 = arith.addf %73, %75 : vector<2x400xf32>
    %77 = arith.maximumf %65, %76 : vector<2x400xf32>
    %c0_22 = arith.constant 0 : index
    %78 = memref.load %arg3[%c0_22] : memref<4xf32, #tpu.memory_space<smem>>
    %79 = vector.broadcast %78 : f32 to vector<2x400xf32>
    %80 = arith.addf %77, %79 : vector<2x400xf32>
    %cst = arith.constant 0.000000e+00 : f32
    %81 = vector.broadcast %cst : f32 to vector<2x400xf32>
    %82 = arith.maximumf %80, %81 : vector<2x400xf32>
    %c0_23 = arith.constant 0 : index
    %c0_24 = arith.constant 0 : index
    %83 = vector.load %arg4[%c0_23, %c0_24] : memref<8x400xf32, #tpu.memory_space<vmem>>, vector<1x400xf32>
    %84 = vector.shape_cast %83 : vector<1x400xf32> to vector<400xf32>
    %85 = vector.shape_cast %84 : vector<400xf32> to vector<1x400xf32>
    %86 = vector.broadcast %85 : vector<1x400xf32> to vector<2x400xf32>
    %87 = arith.mulf %82, %86 : vector<2x400xf32>
    %cst_25 = arith.constant dense<0.000000e+00> : vector<2xf32>
    %88 = vector.multi_reduction <add>, %87, %cst_25 [1] : vector<2x400xf32> to vector<2xf32>
    %89 = vector.shape_cast %88 : vector<2xf32> to vector<2x1xf32>
    %c4_26 = arith.constant 4 : index
    %c0_27 = arith.constant 0 : index
    %90 = vector.load %arg4[%c4_26, %c0_27] : memref<8x400xf32, #tpu.memory_space<vmem>>, vector<1x400xf32>
    %91 = vector.shape_cast %90 : vector<1x400xf32> to vector<400xf32>
    %92 = vector.shape_cast %91 : vector<400xf32> to vector<1x400xf32>
    %93 = vector.broadcast %92 : vector<1x400xf32> to vector<2x400xf32>
    %94 = arith.mulf %82, %93 : vector<2x400xf32>
    %cst_28 = arith.constant dense<0.000000e+00> : vector<2xf32>
    %95 = vector.multi_reduction <add>, %94, %cst_28 [1] : vector<2x400xf32> to vector<2xf32>
    %96 = vector.shape_cast %95 : vector<2xf32> to vector<2x1xf32>
    %cst_29 = arith.constant dense<0.000000e+00> : vector<2xf32>
    %97 = vector.multi_reduction <add>, %82, %cst_29 [1] : vector<2x400xf32> to vector<2xf32>
    %98 = vector.shape_cast %97 : vector<2xf32> to vector<2x1xf32>
    %99 = arith.mulf %82, %82 : vector<2x400xf32>
    %cst_30 = arith.constant dense<0.000000e+00> : vector<2xf32>
    %100 = vector.multi_reduction <add>, %99, %cst_30 [1] : vector<2x400xf32> to vector<2xf32>
    %101 = vector.shape_cast %100 : vector<2xf32> to vector<2x1xf32>
    %c4_31 = arith.constant 4 : index
    %102 = memref.load %arg2[%c4_31] : memref<16xf32, #tpu.memory_space<smem>>
    %c5_32 = arith.constant 5 : index
    %103 = memref.load %arg2[%c5_32] : memref<16xf32, #tpu.memory_space<smem>>
    %c6_33 = arith.constant 6 : index
    %104 = memref.load %arg2[%c6_33] : memref<16xf32, #tpu.memory_space<smem>>
    %c7_34 = arith.constant 7 : index
    %105 = memref.load %arg2[%c7_34] : memref<16xf32, #tpu.memory_space<smem>>
    %106 = vector.broadcast %102 : f32 to vector<2x400xf32>
    %107 = arith.mulf %2, %106 : vector<2x400xf32>
    %108 = vector.broadcast %103 : f32 to vector<2x400xf32>
    %109 = arith.mulf %5, %108 : vector<2x400xf32>
    %110 = arith.addf %107, %109 : vector<2x400xf32>
    %111 = vector.broadcast %104 : f32 to vector<2x400xf32>
    %112 = arith.mulf %11, %111 : vector<2x400xf32>
    %113 = arith.addf %110, %112 : vector<2x400xf32>
    %114 = vector.broadcast %105 : f32 to vector<2x400xf32>
    %115 = arith.mulf %14, %114 : vector<2x400xf32>
    %116 = arith.addf %113, %115 : vector<2x400xf32>
    %117 = vector.broadcast %102 : f32 to vector<2x400xf32>
    %118 = arith.mulf %5, %117 : vector<2x400xf32>
    %119 = vector.broadcast %103 : f32 to vector<2x400xf32>
    %120 = arith.mulf %8, %119 : vector<2x400xf32>
    %121 = arith.addf %118, %120 : vector<2x400xf32>
    %122 = vector.broadcast %104 : f32 to vector<2x400xf32>
    %123 = arith.mulf %14, %122 : vector<2x400xf32>
    %124 = arith.addf %121, %123 : vector<2x400xf32>
    %125 = vector.broadcast %105 : f32 to vector<2x400xf32>
    %126 = arith.mulf %17, %125 : vector<2x400xf32>
    %127 = arith.addf %124, %126 : vector<2x400xf32>
    %128 = arith.maximumf %116, %127 : vector<2x400xf32>
    %129 = vector.broadcast %102 : f32 to vector<2x400xf32>
    %130 = arith.mulf %11, %129 : vector<2x400xf32>
    %131 = vector.broadcast %103 : f32 to vector<2x400xf32>
    %132 = arith.mulf %14, %131 : vector<2x400xf32>
    %133 = arith.addf %130, %132 : vector<2x400xf32>
    %134 = vector.broadcast %104 : f32 to vector<2x400xf32>
    %135 = arith.mulf %20, %134 : vector<2x400xf32>
    %136 = arith.addf %133, %135 : vector<2x400xf32>
    %137 = vector.broadcast %105 : f32 to vector<2x400xf32>
    %138 = arith.mulf %23, %137 : vector<2x400xf32>
    %139 = arith.addf %136, %138 : vector<2x400xf32>
    %140 = arith.maximumf %128, %139 : vector<2x400xf32>
    %141 = vector.broadcast %102 : f32 to vector<2x400xf32>
    %142 = arith.mulf %14, %141 : vector<2x400xf32>
    %143 = vector.broadcast %103 : f32 to vector<2x400xf32>
    %144 = arith.mulf %17, %143 : vector<2x400xf32>
    %145 = arith.addf %142, %144 : vector<2x400xf32>
    %146 = vector.broadcast %104 : f32 to vector<2x400xf32>
    %147 = arith.mulf %23, %146 : vector<2x400xf32>
    %148 = arith.addf %145, %147 : vector<2x400xf32>
    %149 = vector.broadcast %105 : f32 to vector<2x400xf32>
    %150 = arith.mulf %26, %149 : vector<2x400xf32>
    %151 = arith.addf %148, %150 : vector<2x400xf32>
    %152 = arith.maximumf %140, %151 : vector<2x400xf32>
    %c1_35 = arith.constant 1 : index
    %153 = memref.load %arg3[%c1_35] : memref<4xf32, #tpu.memory_space<smem>>
    %154 = vector.broadcast %153 : f32 to vector<2x400xf32>
    %155 = arith.addf %152, %154 : vector<2x400xf32>
    %cst_36 = arith.constant 0.000000e+00 : f32
    %156 = vector.broadcast %cst_36 : f32 to vector<2x400xf32>
    %157 = arith.maximumf %155, %156 : vector<2x400xf32>
    %c1_37 = arith.constant 1 : index
    %c0_38 = arith.constant 0 : index
    %158 = vector.load %arg4[%c1_37, %c0_38] : memref<8x400xf32, #tpu.memory_space<vmem>>, vector<1x400xf32>
    %159 = vector.shape_cast %158 : vector<1x400xf32> to vector<400xf32>
    %160 = vector.shape_cast %159 : vector<400xf32> to vector<1x400xf32>
    %161 = vector.broadcast %160 : vector<1x400xf32> to vector<2x400xf32>
    %162 = arith.mulf %157, %161 : vector<2x400xf32>
    %cst_39 = arith.constant dense<0.000000e+00> : vector<2xf32>
    %163 = vector.multi_reduction <add>, %162, %cst_39 [1] : vector<2x400xf32> to vector<2xf32>
    %164 = vector.shape_cast %163 : vector<2xf32> to vector<2x1xf32>
    %c5_40 = arith.constant 5 : index
    %c0_41 = arith.constant 0 : index
    %165 = vector.load %arg4[%c5_40, %c0_41] : memref<8x400xf32, #tpu.memory_space<vmem>>, vector<1x400xf32>
    %166 = vector.shape_cast %165 : vector<1x400xf32> to vector<400xf32>
    %167 = vector.shape_cast %166 : vector<400xf32> to vector<1x400xf32>
    %168 = vector.broadcast %167 : vector<1x400xf32> to vector<2x400xf32>
    %169 = arith.mulf %157, %168 : vector<2x400xf32>
    %cst_42 = arith.constant dense<0.000000e+00> : vector<2xf32>
    %170 = vector.multi_reduction <add>, %169, %cst_42 [1] : vector<2x400xf32> to vector<2xf32>
    %171 = vector.shape_cast %170 : vector<2xf32> to vector<2x1xf32>
    %cst_43 = arith.constant dense<0.000000e+00> : vector<2xf32>
    %172 = vector.multi_reduction <add>, %157, %cst_43 [1] : vector<2x400xf32> to vector<2xf32>
    %173 = vector.shape_cast %172 : vector<2xf32> to vector<2x1xf32>
    %174 = arith.mulf %157, %157 : vector<2x400xf32>
    %cst_44 = arith.constant dense<0.000000e+00> : vector<2xf32>
    %175 = vector.multi_reduction <add>, %174, %cst_44 [1] : vector<2x400xf32> to vector<2xf32>
    %176 = vector.shape_cast %175 : vector<2xf32> to vector<2x1xf32>
    %c8_45 = arith.constant 8 : index
    %177 = memref.load %arg2[%c8_45] : memref<16xf32, #tpu.memory_space<smem>>
    %c9 = arith.constant 9 : index
    %178 = memref.load %arg2[%c9] : memref<16xf32, #tpu.memory_space<smem>>
    %c10 = arith.constant 10 : index
    %179 = memref.load %arg2[%c10] : memref<16xf32, #tpu.memory_space<smem>>
    %c11 = arith.constant 11 : index
    %180 = memref.load %arg2[%c11] : memref<16xf32, #tpu.memory_space<smem>>
    %181 = vector.broadcast %177 : f32 to vector<2x400xf32>
    %182 = arith.mulf %2, %181 : vector<2x400xf32>
    %183 = vector.broadcast %178 : f32 to vector<2x400xf32>
    %184 = arith.mulf %5, %183 : vector<2x400xf32>
    %185 = arith.addf %182, %184 : vector<2x400xf32>
    %186 = vector.broadcast %179 : f32 to vector<2x400xf32>
    %187 = arith.mulf %11, %186 : vector<2x400xf32>
    %188 = arith.addf %185, %187 : vector<2x400xf32>
    %189 = vector.broadcast %180 : f32 to vector<2x400xf32>
    %190 = arith.mulf %14, %189 : vector<2x400xf32>
    %191 = arith.addf %188, %190 : vector<2x400xf32>
    %192 = vector.broadcast %177 : f32 to vector<2x400xf32>
    %193 = arith.mulf %5, %192 : vector<2x400xf32>
    %194 = vector.broadcast %178 : f32 to vector<2x400xf32>
    %195 = arith.mulf %8, %194 : vector<2x400xf32>
    %196 = arith.addf %193, %195 : vector<2x400xf32>
    %197 = vector.broadcast %179 : f32 to vector<2x400xf32>
    %198 = arith.mulf %14, %197 : vector<2x400xf32>
    %199 = arith.addf %196, %198 : vector<2x400xf32>
    %200 = vector.broadcast %180 : f32 to vector<2x400xf32>
    %201 = arith.mulf %17, %200 : vector<2x400xf32>
    %202 = arith.addf %199, %201 : vector<2x400xf32>
    %203 = arith.maximumf %191, %202 : vector<2x400xf32>
    %204 = vector.broadcast %177 : f32 to vector<2x400xf32>
    %205 = arith.mulf %11, %204 : vector<2x400xf32>
    %206 = vector.broadcast %178 : f32 to vector<2x400xf32>
    %207 = arith.mulf %14, %206 : vector<2x400xf32>
    %208 = arith.addf %205, %207 : vector<2x400xf32>
    %209 = vector.broadcast %179 : f32 to vector<2x400xf32>
    %210 = arith.mulf %20, %209 : vector<2x400xf32>
    %211 = arith.addf %208, %210 : vector<2x400xf32>
    %212 = vector.broadcast %180 : f32 to vector<2x400xf32>
    %213 = arith.mulf %23, %212 : vector<2x400xf32>
    %214 = arith.addf %211, %213 : vector<2x400xf32>
    %215 = arith.maximumf %203, %214 : vector<2x400xf32>
    %216 = vector.broadcast %177 : f32 to vector<2x400xf32>
    %217 = arith.mulf %14, %216 : vector<2x400xf32>
    %218 = vector.broadcast %178 : f32 to vector<2x400xf32>
    %219 = arith.mulf %17, %218 : vector<2x400xf32>
    %220 = arith.addf %217, %219 : vector<2x400xf32>
    %221 = vector.broadcast %179 : f32 to vector<2x400xf32>
    %222 = arith.mulf %23, %221 : vector<2x400xf32>
    %223 = arith.addf %220, %222 : vector<2x400xf32>
    %224 = vector.broadcast %180 : f32 to vector<2x400xf32>
    %225 = arith.mulf %26, %224 : vector<2x400xf32>
    %226 = arith.addf %223, %225 : vector<2x400xf32>
    %227 = arith.maximumf %215, %226 : vector<2x400xf32>
    %c2_46 = arith.constant 2 : index
    %228 = memref.load %arg3[%c2_46] : memref<4xf32, #tpu.memory_space<smem>>
    %229 = vector.broadcast %228 : f32 to vector<2x400xf32>
    %230 = arith.addf %227, %229 : vector<2x400xf32>
    %cst_47 = arith.constant 0.000000e+00 : f32
    %231 = vector.broadcast %cst_47 : f32 to vector<2x400xf32>
    %232 = arith.maximumf %230, %231 : vector<2x400xf32>
    %c2_48 = arith.constant 2 : index
    %c0_49 = arith.constant 0 : index
    %233 = vector.load %arg4[%c2_48, %c0_49] : memref<8x400xf32, #tpu.memory_space<vmem>>, vector<1x400xf32>
    %234 = vector.shape_cast %233 : vector<1x400xf32> to vector<400xf32>
    %235 = vector.shape_cast %234 : vector<400xf32> to vector<1x400xf32>
    %236 = vector.broadcast %235 : vector<1x400xf32> to vector<2x400xf32>
    %237 = arith.mulf %232, %236 : vector<2x400xf32>
    %cst_50 = arith.constant dense<0.000000e+00> : vector<2xf32>
    %238 = vector.multi_reduction <add>, %237, %cst_50 [1] : vector<2x400xf32> to vector<2xf32>
    %239 = vector.shape_cast %238 : vector<2xf32> to vector<2x1xf32>
    %c6_51 = arith.constant 6 : index
    %c0_52 = arith.constant 0 : index
    %240 = vector.load %arg4[%c6_51, %c0_52] : memref<8x400xf32, #tpu.memory_space<vmem>>, vector<1x400xf32>
    %241 = vector.shape_cast %240 : vector<1x400xf32> to vector<400xf32>
    %242 = vector.shape_cast %241 : vector<400xf32> to vector<1x400xf32>
    %243 = vector.broadcast %242 : vector<1x400xf32> to vector<2x400xf32>
    %244 = arith.mulf %232, %243 : vector<2x400xf32>
    %cst_53 = arith.constant dense<0.000000e+00> : vector<2xf32>
    %245 = vector.multi_reduction <add>, %244, %cst_53 [1] : vector<2x400xf32> to vector<2xf32>
    %246 = vector.shape_cast %245 : vector<2xf32> to vector<2x1xf32>
    %cst_54 = arith.constant dense<0.000000e+00> : vector<2xf32>
    %247 = vector.multi_reduction <add>, %232, %cst_54 [1] : vector<2x400xf32> to vector<2xf32>
    %248 = vector.shape_cast %247 : vector<2xf32> to vector<2x1xf32>
    %249 = arith.mulf %232, %232 : vector<2x400xf32>
    %cst_55 = arith.constant dense<0.000000e+00> : vector<2xf32>
    %250 = vector.multi_reduction <add>, %249, %cst_55 [1] : vector<2x400xf32> to vector<2xf32>
    %251 = vector.shape_cast %250 : vector<2xf32> to vector<2x1xf32>
    %c12 = arith.constant 12 : index
    %252 = memref.load %arg2[%c12] : memref<16xf32, #tpu.memory_space<smem>>
    %c13 = arith.constant 13 : index
    %253 = memref.load %arg2[%c13] : memref<16xf32, #tpu.memory_space<smem>>
    %c14 = arith.constant 14 : index
    %254 = memref.load %arg2[%c14] : memref<16xf32, #tpu.memory_space<smem>>
    %c15 = arith.constant 15 : index
    %255 = memref.load %arg2[%c15] : memref<16xf32, #tpu.memory_space<smem>>
    %256 = vector.broadcast %252 : f32 to vector<2x400xf32>
    %257 = arith.mulf %2, %256 : vector<2x400xf32>
    %258 = vector.broadcast %253 : f32 to vector<2x400xf32>
    %259 = arith.mulf %5, %258 : vector<2x400xf32>
    %260 = arith.addf %257, %259 : vector<2x400xf32>
    %261 = vector.broadcast %254 : f32 to vector<2x400xf32>
    %262 = arith.mulf %11, %261 : vector<2x400xf32>
    %263 = arith.addf %260, %262 : vector<2x400xf32>
    %264 = vector.broadcast %255 : f32 to vector<2x400xf32>
    %265 = arith.mulf %14, %264 : vector<2x400xf32>
    %266 = arith.addf %263, %265 : vector<2x400xf32>
    %267 = vector.broadcast %252 : f32 to vector<2x400xf32>
    %268 = arith.mulf %5, %267 : vector<2x400xf32>
    %269 = vector.broadcast %253 : f32 to vector<2x400xf32>
    %270 = arith.mulf %8, %269 : vector<2x400xf32>
    %271 = arith.addf %268, %270 : vector<2x400xf32>
    %272 = vector.broadcast %254 : f32 to vector<2x400xf32>
    %273 = arith.mulf %14, %272 : vector<2x400xf32>
    %274 = arith.addf %271, %273 : vector<2x400xf32>
    %275 = vector.broadcast %255 : f32 to vector<2x400xf32>
    %276 = arith.mulf %17, %275 : vector<2x400xf32>
    %277 = arith.addf %274, %276 : vector<2x400xf32>
    %278 = arith.maximumf %266, %277 : vector<2x400xf32>
    %279 = vector.broadcast %252 : f32 to vector<2x400xf32>
    %280 = arith.mulf %11, %279 : vector<2x400xf32>
    %281 = vector.broadcast %253 : f32 to vector<2x400xf32>
    %282 = arith.mulf %14, %281 : vector<2x400xf32>
    %283 = arith.addf %280, %282 : vector<2x400xf32>
    %284 = vector.broadcast %254 : f32 to vector<2x400xf32>
    %285 = arith.mulf %20, %284 : vector<2x400xf32>
    %286 = arith.addf %283, %285 : vector<2x400xf32>
    %287 = vector.broadcast %255 : f32 to vector<2x400xf32>
    %288 = arith.mulf %23, %287 : vector<2x400xf32>
    %289 = arith.addf %286, %288 : vector<2x400xf32>
    %290 = arith.maximumf %278, %289 : vector<2x400xf32>
    %291 = vector.broadcast %252 : f32 to vector<2x400xf32>
    %292 = arith.mulf %14, %291 : vector<2x400xf32>
    %293 = vector.broadcast %253 : f32 to vector<2x400xf32>
    %294 = arith.mulf %17, %293 : vector<2x400xf32>
    %295 = arith.addf %292, %294 : vector<2x400xf32>
    %296 = vector.broadcast %254 : f32 to vector<2x400xf32>
    %297 = arith.mulf %23, %296 : vector<2x400xf32>
    %298 = arith.addf %295, %297 : vector<2x400xf32>
    %299 = vector.broadcast %255 : f32 to vector<2x400xf32>
    %300 = arith.mulf %26, %299 : vector<2x400xf32>
    %301 = arith.addf %298, %300 : vector<2x400xf32>
    %302 = arith.maximumf %290, %301 : vector<2x400xf32>
    %c3_56 = arith.constant 3 : index
    %303 = memref.load %arg3[%c3_56] : memref<4xf32, #tpu.memory_space<smem>>
    %304 = vector.broadcast %303 : f32 to vector<2x400xf32>
    %305 = arith.addf %302, %304 : vector<2x400xf32>
    %cst_57 = arith.constant 0.000000e+00 : f32
    %306 = vector.broadcast %cst_57 : f32 to vector<2x400xf32>
    %307 = arith.maximumf %305, %306 : vector<2x400xf32>
    %c3_58 = arith.constant 3 : index
    %c0_59 = arith.constant 0 : index
    %308 = vector.load %arg4[%c3_58, %c0_59] : memref<8x400xf32, #tpu.memory_space<vmem>>, vector<1x400xf32>
    %309 = vector.shape_cast %308 : vector<1x400xf32> to vector<400xf32>
    %310 = vector.shape_cast %309 : vector<400xf32> to vector<1x400xf32>
    %311 = vector.broadcast %310 : vector<1x400xf32> to vector<2x400xf32>
    %312 = arith.mulf %307, %311 : vector<2x400xf32>
    %cst_60 = arith.constant dense<0.000000e+00> : vector<2xf32>
    %313 = vector.multi_reduction <add>, %312, %cst_60 [1] : vector<2x400xf32> to vector<2xf32>
    %314 = vector.shape_cast %313 : vector<2xf32> to vector<2x1xf32>
    %c7_61 = arith.constant 7 : index
    %c0_62 = arith.constant 0 : index
    %315 = vector.load %arg4[%c7_61, %c0_62] : memref<8x400xf32, #tpu.memory_space<vmem>>, vector<1x400xf32>
    %316 = vector.shape_cast %315 : vector<1x400xf32> to vector<400xf32>
    %317 = vector.shape_cast %316 : vector<400xf32> to vector<1x400xf32>
    %318 = vector.broadcast %317 : vector<1x400xf32> to vector<2x400xf32>
    %319 = arith.mulf %307, %318 : vector<2x400xf32>
    %cst_63 = arith.constant dense<0.000000e+00> : vector<2xf32>
    %320 = vector.multi_reduction <add>, %319, %cst_63 [1] : vector<2x400xf32> to vector<2xf32>
    %321 = vector.shape_cast %320 : vector<2xf32> to vector<2x1xf32>
    %cst_64 = arith.constant dense<0.000000e+00> : vector<2xf32>
    %322 = vector.multi_reduction <add>, %307, %cst_64 [1] : vector<2x400xf32> to vector<2xf32>
    %323 = vector.shape_cast %322 : vector<2xf32> to vector<2x1xf32>
    %324 = arith.mulf %307, %307 : vector<2x400xf32>
    %cst_65 = arith.constant dense<0.000000e+00> : vector<2xf32>
    %325 = vector.multi_reduction <add>, %324, %cst_65 [1] : vector<2x400xf32> to vector<2xf32>
    %326 = vector.shape_cast %325 : vector<2xf32> to vector<2x1xf32>
    %327 = tpu.concatenate %89, %164, %239, %314, %96, %171, %246, %321, %98, %173, %248, %323, %101, %176, %251, %326 in 1 : vector<2x1xf32>, vector<2x1xf32>, vector<2x1xf32>, vector<2x1xf32>, vector<2x1xf32>, vector<2x1xf32>, vector<2x1xf32>, vector<2x1xf32>, vector<2x1xf32>, vector<2x1xf32>, vector<2x1xf32>, vector<2x1xf32>, vector<2x1xf32>, vector<2x1xf32>, vector<2x1xf32>, vector<2x1xf32> -> vector<2x16xf32>
    %c0_66 = arith.constant 0 : index
    %c0_67 = arith.constant 0 : index
    %328 = vector.load %arg5[%c0_66, %c0_67] : memref<2x16xf32, #tpu.memory_space<vmem>>, vector<2x16xf32>
    tpu.vector_store %arg5[%c0_66, %c0_67], %327 {strides = array<i32>} : memref<2x16xf32, #tpu.memory_space<vmem>>, vector<2x16xf32>,
    return
  }
  func.func @transform_0(%arg0: i32) -> (i32, i32, i32) {
    %c0_i32 = arith.constant 0 : i32
    %c0_i32_0 = arith.constant 0 : i32
    %c0_i32_1 = arith.constant 0 : i32
    return %c0_i32, %arg0, %c0_i32_0 : i32, i32, i32
  }
  func.func @transform_1(%arg0: i32) -> i32 {
    %c0_i32 = arith.constant 0 : i32
    %c0_i32_0 = arith.constant 0 : i32
    return %c0_i32 : i32
  }
  func.func @transform_2(%arg0: i32) -> i32 {
    %c0_i32 = arith.constant 0 : i32
    %c0_i32_0 = arith.constant 0 : i32
    return %c0_i32 : i32
  }
  func.func @transform_3(%arg0: i32) -> (i32, i32) {
    %c0_i32 = arith.constant 0 : i32
    %c0_i32_0 = arith.constant 0 : i32
    %c0_i32_1 = arith.constant 0 : i32
    return %c0_i32, %c0_i32_0 : i32, i32
  }
  func.func @transform_4(%arg0: i32) -> (i32, i32) {
    %c0_i32 = arith.constant 0 : i32
    %c0_i32_0 = arith.constant 0 : i32
    return %arg0, %c0_i32 : i32, i32
  }
}

</mosaic_0001>

<llo_original>
// kernel: ising_forward.1
$region0: #{ising_forward.1}
  #allocation0 [shape = 'u32[]', space=smem, size = 0x4, offset = 0x4, fixed_abs, tag = 'smem constant byte address 0x4 - core index']
  #allocation1 [shape = 'u32[144,128]{1,0:T(1,128)}', space=vmem, size = 0x12000, scoped, tag = 'internal scratch']
  %s0 = inlined_call_operand.vmem [shape: bf16[9,2,400], index: 0, kind: input, shape index: {}]
  %s1 = inlined_call_operand.vmem [shape: f32[16], index: 1, kind: input, shape index: {}]
  %s2 = inlined_call_operand.vmem [shape: f32[4], index: 2, kind: input, shape index: {}]
  %s3 = inlined_call_operand.vmem [shape: f32[8,400], index: 3, kind: input, shape index: {}]
  %s4 = inlined_call_operand.vmem [shape: f32[2,16], index: 4, kind: output, shape index: {}]
  %s5 = sld [smem:[#allocation0]]
  $region34: #{ising_forward.1} parent=0
    _
  %s7 = ssub.s32 1, %s5
  %s8 = scalar_select 0, %s7, %s5
  $region1: #{ising_forward.1} parent=0
    #allocation2 [shape = 'u8[512]{0}', space=smem, size = 0x200, scoped, tag = 'input window, operand 1, single buffered']
    #allocation3 [shape = 's32[1]{0}', space=sflag, size = 0x4, scoped, tag = 'scoped memory for ising_forward.1']
    #allocation4 [shape = 'u8[512]{0}', space=smem, size = 0x200, scoped, tag = 'input window, operand 2, single buffered']
    #allocation5 [shape = 's32[1]{0}', space=sflag, size = 0x4, scoped, tag = 'scoped memory for ising_forward.1']
    %9 = vsyncpa [#allocation3], 0
    %10 = vsyncpa [#allocation5], 0
    // Predicated region
    $region2: #{ising_forward.1} parent=1 // pred_check
      _
    $region3: #{ising_forward.1} parent=1 // pred_check_branch
      %12 = sbr.rel (0) target = $region5
    $region4: #{ising_forward.1} parent=1 // pred_region
      _
    $region5: #{ising_forward.1} parent=1 // pred_fallthru
      _
    // Predicated region
    $region6: #{ising_forward.1} parent=1 // pred_check
      _
    $region7: #{ising_forward.1} parent=1 // pred_check_branch
      %14 = sbr.rel (0) target = $region9
    $region8: #{ising_forward.1} parent=1 // pred_region
      %s16 = ssub.s32 16, 16
      %17 = vsyncadd [#allocation3], %s16
      %s19 = sshll.u32 %s1, 4
      %s20 = int_to_ptr.vmem [resolvable:$true] %s19
      %22 = dma.vmem_to_smem %s20, 16, [#allocation2], [#allocation3]
    $region9: #{ising_forward.1} parent=1 // pred_fallthru
      _
    // Predicated region
    $region10: #{ising_forward.1} parent=1 // pred_check
      _
    $region11: #{ising_forward.1} parent=1 // pred_check_branch
      %24 = sbr.rel (0) target = $region13
    $region12: #{ising_forward.1} parent=1 // pred_region
      %s26 = ssub.s32 16, 16
      %27 = vsyncadd [#allocation5], %s26
      %s29 = sshll.u32 %s2, 4
      %s30 = int_to_ptr.vmem [resolvable:$true] %s29
      %32 = dma.vmem_to_smem %s30, 16, [#allocation4], [#allocation5]
    $region13: #{ising_forward.1} parent=1 // pred_fallthru
      _
    // Predicated region
    $region14: #{ising_forward.1} parent=1 // pred_check
      _
    $region15: #{ising_forward.1} parent=1 // pred_check_branch
      %34 = sbr.rel (0) target = $region17
    $region16: #{ising_forward.1} parent=1 // pred_region
      _
    $region17: #{ising_forward.1} parent=1 // pred_fallthru
      _
    // Predicated region
    $region18: #{ising_forward.1} parent=1 // pred_check
      _
    $region19: #{ising_forward.1} parent=1 // pred_check_branch
      %36 = sbr.rel (0) target = $region21
    $region20: #{ising_forward.1} parent=1 // pred_region
      %37 = dma.done [#allocation3], 16
    $region21: #{ising_forward.1} parent=1 // pred_fallthru
      _
    // Predicated region
    $region22: #{ising_forward.1} parent=1 // pred_check
      _
    $region23: #{ising_forward.1} parent=1 // pred_check_branch
      %39 = sbr.rel (0) target = $region25
    $region24: #{ising_forward.1} parent=1 // pred_region
      %40 = dma.done [#allocation5], 16
    $region25: #{ising_forward.1} parent=1 // pred_fallthru
      _
    %41 = sfence
    %v42 = vld [vmem:[%s0] sm:$0xf]
    %v43 = vunpack.c.l.bf16 %v42
    %s44 = scalar_lea.vmem %s0, 4
    %v45 = vld [vmem:[%s44] sm:$0xf]
    %v46 = vunpack.c.l.bf16 %v45
    %s47 = scalar_lea.vmem %s0, 8
    %v48 = vld [vmem:[%s47] sm:$0xf]
    %v49 = vunpack.c.l.bf16 %v48
    %s50 = scalar_lea.vmem %s0, 12
    %v51 = vld [vmem:[%s50] sm:$0xf]
    %v52 = vunpack.c.l.bf16 %v51
    %s53 = scalar_lea.vmem %s0, 16
    %v54 = vld [vmem:[%s53] sm:$0xf]
    %v55 = vunpack.c.l.bf16 %v54
    %s56 = scalar_lea.vmem %s0, 20
    %v57 = vld [vmem:[%s56] sm:$0xf]
    %v58 = vunpack.c.l.bf16 %v57
    %s59 = scalar_lea.vmem %s0, 24
    %v60 = vld [vmem:[%s59] sm:$0xf]
    %v61 = vunpack.c.l.bf16 %v60
    %s62 = scalar_lea.vmem %s0, 28
    %v63 = vld [vmem:[%s62] sm:$0xf]
    %v64 = vunpack.c.l.bf16 %v63
    %s65 = scalar_lea.vmem %s0, 32
    %v66 = vld [vmem:[%s65] sm:$0xf]
    %v67 = vunpack.c.l.bf16 %v66
    %s68 = sld [smem:[#allocation2]]
    %s69 = sld [smem:[#allocation2 + $0x1]]
    %s70 = sld [smem:[#allocation2 + $0x2]]
    %s71 = sld [smem:[#allocation2 + $0x3]]
    %v72 = vstv %s68
    %v73 = vmul.f32 %v43, %v72
    %v74 = vstv %s69
    %v75 = vmul.f32 %v46, %v74
    %v76 = vadd.f32 %v73, %v75
    %v77 = vstv %s70
    %v78 = vmul.f32 %v52, %v77
    %v79 = vadd.f32 %v76, %v78
    %v80 = vstv %s71
    %v81 = vmul.f32 %v55, %v80
    %v82 = vadd.f32 %v79, %v81
    %v83 = vmul.f32 %v46, %v72
    %v84 = vmul.f32 %v49, %v74
    %v85 = vadd.f32 %v83, %v84
    %v86 = vmul.f32 %v55, %v77
    %v87 = vadd.f32 %v85, %v86
    %v88 = vmul.f32 %v58, %v80
    %v89 = vadd.f32 %v87, %v88
    %v90 = vmax.f32 %v82, %v89
    %v91 = vmul.f32 %v52, %v72
    %v92 = vmul.f32 %v55, %v74
    %v93 = vadd.f32 %v91, %v92
    %v94 = vmul.f32 %v61, %v77
    %v95 = vadd.f32 %v93, %v94
    %v96 = vmul.f32 %v64, %v80
    %v97 = vadd.f32 %v95, %v96
    %v98 = vmax.f32 %v90, %v97
    %v99 = vmul.f32 %v55, %v72
    %v100 = vmul.f32 %v58, %v74
    %v101 = vadd.f32 %v99, %v100
    %v102 = vmul.f32 %v64, %v77
    %v103 = vadd.f32 %v101, %v102
    %v104 = vmul.f32 %v67, %v80
    %v105 = vadd.f32 %v103, %v104
    %v106 = vmax.f32 %v98, %v105
    %s107 = sld [smem:[#allocation4]]
    %v108 = vstv %s107
    %v109 = vadd.f32 %v106, %v108
    %v110 = vmax.f32 %v109, 0.0
    %v111 = vld [vmem:[%s3] ss:$8 sm:$0xf]
    %v113 = vlaneseq
    %v114 = vshrl.u32 %v113, 7
    %v115 = vsub.s32 0, %v114
    %v116 = vrot.slane %v111, %v115
    %v117 = vlaneseq
    %v118 = vshrl.u32 %v117, 7
    %v119 = vsub.s32 1, %v118
    %v120 = vrot.slane %v111, %v119
    %v121 = vlaneseq
    %v122 = vshrl.u32 %v121, 7
    %v123 = vsub.s32 2, %v122
    %v124 = vrot.slane %v111, %v123
    %v125 = vlaneseq
    %v126 = vshrl.u32 %v125, 7
    %v127 = vsub.s32 3, %v126
    %v128 = vrot.slane %v111, %v127
    %v129 = vcombine.low %v116, %v120
    %v130 = vcombine.low %v124, %v128
    %v132 = vunpack.c.l.s4 1983009808
    %v133 = vunpack.c.0.s8 %v132
    %v134 = vlaneseq
    %v135 = vshrl.u32 %v134, 7
    %v136 = vsub.s32 %v133, %v135
    %v137 = vrot.slane %v129, %v136
    %v139 = vunpack.c.l.s4 1983009808
    %v140 = vunpack.c.0.s8 %v139
    %v141 = vlaneseq
    %v142 = vshrl.u32 %v141, 7
    %v143 = vsub.s32 %v140, %v142
    %v144 = vrot.slane %v130, %v143
    %v145 = vcombine.low %v137, %v144
    %v147 = vmul.f32 %v110, %v145
    %v149 = vcombine.high %v147, %v147
    %v151 = vunpack.c.l.s4 1983009808
    %v152 = vunpack.c.0.s8 %v151
    %v153 = vlaneseq
    %v154 = vshrl.u32 %v153, 7
    %v155 = vsub.s32 %v152, %v154
    %v156 = vrot.slane %v147, %v155
    %v158 = vunpack.c.l.s4 1983009808
    %v159 = vunpack.c.0.s8 %v158
    %v160 = vlaneseq
    %v161 = vshrl.u32 %v160, 7
    %v162 = vsub.s32 %v159, %v161
    %v163 = vrot.slane %v149, %v162
    %v164 = vcombine.high %v156, %v156
    %v165 = vcombine.high %v163, %v163
    %vm170 = vcmask 1041408
    %v171 = vsel %vm170, %v156, 0.0
    %v172 = vsel %vm170, %v164, 0.0
    %v173 = vadd.f32 %v171, %v172
    %v174 = vsel %vm170, %v163, 0.0
    %v175 = vadd.f32 %v173, %v174
    %vm176 = vcmask 123904
    %v177 = vsel %vm176, %v165, 0.0
    %v178 = vadd.f32 %v175, %v177
    %179 = vadd.xlane.f32.xlu0 %v178
    %v180 = vpop.xlane.xlu0 %179
    %s181 = scalar_lea.vmem %s3, 4
    %v182 = vld [vmem:[%s181] ss:$8 sm:$0xf]
    %v184 = vlaneseq
    %v185 = vshrl.u32 %v184, 7
    %v186 = vsub.s32 0, %v185
    %v187 = vrot.slane %v182, %v186
    %v188 = vlaneseq
    %v189 = vshrl.u32 %v188, 7
    %v190 = vsub.s32 1, %v189
    %v191 = vrot.slane %v182, %v190
    %v192 = vlaneseq
    %v193 = vshrl.u32 %v192, 7
    %v194 = vsub.s32 2, %v193
    %v195 = vrot.slane %v182, %v194
    %v196 = vlaneseq
    %v197 = vshrl.u32 %v196, 7
    %v198 = vsub.s32 3, %v197
    %v199 = vrot.slane %v182, %v198
    %v200 = vcombine.low %v187, %v191
    %v201 = vcombine.low %v195, %v199
    %v203 = vunpack.c.l.s4 1983009808
    %v204 = vunpack.c.0.s8 %v203
    %v205 = vlaneseq
    %v206 = vshrl.u32 %v205, 7
    %v207 = vsub.s32 %v204, %v206
    %v208 = vrot.slane %v200, %v207
    %v210 = vunpack.c.l.s4 1983009808
    %v211 = vunpack.c.0.s8 %v210
    %v212 = vlaneseq
    %v213 = vshrl.u32 %v212, 7
    %v214 = vsub.s32 %v211, %v213
    %v215 = vrot.slane %v201, %v214
    %v216 = vcombine.low %v208, %v215
    %v218 = vmul.f32 %v110, %v216
    %v220 = vcombine.high %v218, %v218
    %v222 = vunpack.c.l.s4 1983009808
    %v223 = vunpack.c.0.s8 %v222
    %v224 = vlaneseq
    %v225 = vshrl.u32 %v224, 7
    %v226 = vsub.s32 %v223, %v225
    %v227 = vrot.slane %v218, %v226
    %v229 = vunpack.c.l.s4 1983009808
    %v230 = vunpack.c.0.s8 %v229
    %v231 = vlaneseq
    %v232 = vshrl.u32 %v231, 7
    %v233 = vsub.s32 %v230, %v232
    %v234 = vrot.slane %v220, %v233
    %v235 = vcombine.high %v227, %v227
    %v236 = vcombine.high %v234, %v234
    %v241 = vsel %vm170, %v227, 0.0
    %v242 = vsel %vm170, %v235, 0.0
    %v243 = vadd.f32 %v241, %v242
    %v244 = vsel %vm170, %v234, 0.0
    %v245 = vadd.f32 %v243, %v244
    %v246 = vsel %vm176, %v236, 0.0
    %v247 = vadd.f32 %v245, %v246
    %248 = vadd.xlane.f32.xlu0 %v247
    %v249 = vpop.xlane.xlu0 %248
    %v251 = vcombine.high %v110, %v110
    %v253 = vunpack.c.l.s4 1983009808
    %v254 = vunpack.c.0.s8 %v253
    %v255 = vlaneseq
    %v256 = vshrl.u32 %v255, 7
    %v257 = vsub.s32 %v254, %v256
    %v258 = vrot.slane %v110, %v257
    %v260 = vunpack.c.l.s4 1983009808
    %v261 = vunpack.c.0.s8 %v260
    %v262 = vlaneseq
    %v263 = vshrl.u32 %v262, 7
    %v264 = vsub.s32 %v261, %v263
    %v265 = vrot.slane %v251, %v264
    %v266 = vcombine.high %v258, %v258
    %v267 = vcombine.high %v265, %v265
    %v272 = vsel %vm170, %v258, 0.0
    %v273 = vsel %vm170, %v266, 0.0
    %v274 = vadd.f32 %v272, %v273
    %v275 = vsel %vm170, %v265, 0.0
    %v276 = vadd.f32 %v274, %v275
    %v277 = vsel %vm176, %v267, 0.0
    %v278 = vadd.f32 %v276, %v277
    %279 = vadd.xlane.f32.xlu0 %v278
    %v280 = vpop.xlane.xlu0 %279
    %v281 = vmul.f32 %v110, %v110
    %v283 = vcombine.high %v281, %v281
    %v285 = vunpack.c.l.s4 1983009808
    %v286 = vunpack.c.0.s8 %v285
    %v287 = vlaneseq
    %v288 = vshrl.u32 %v287, 7
    %v289 = vsub.s32 %v286, %v288
    %v290 = vrot.slane %v281, %v289
    %v292 = vunpack.c.l.s4 1983009808
    %v293 = vunpack.c.0.s8 %v292
    %v294 = vlaneseq
    %v295 = vshrl.u32 %v294, 7
    %v296 = vsub.s32 %v293, %v295
    %v297 = vrot.slane %v283, %v296
    %v298 = vcombine.high %v290, %v290
    %v299 = vcombine.high %v297, %v297
    %v304 = vsel %vm170, %v290, 0.0
    %v305 = vsel %vm170, %v298, 0.0
    %v306 = vadd.f32 %v304, %v305
    %v307 = vsel %vm170, %v297, 0.0
    %v308 = vadd.f32 %v306, %v307
    %v309 = vsel %vm176, %v299, 0.0
    %v310 = vadd.f32 %v308, %v309
    %311 = vadd.xlane.f32.xlu0 %v310
    %v312 = vpop.xlane.xlu0 %311
    %s313 = sld [smem:[#allocation2 + $0x4]]
    %s314 = sld [smem:[#allocation2 + $0x5]]
    %s315 = sld [smem:[#allocation2 + $0x6]]
    %s316 = sld [smem:[#allocation2 + $0x7]]
    %v317 = vstv %s313
    %v318 = vmul.f32 %v43, %v317
    %v319 = vstv %s314
    %v320 = vmul.f32 %v46, %v319
    %v321 = vadd.f32 %v318, %v320
    %v322 = vstv %s315
    %v323 = vmul.f32 %v52, %v322
    %v324 = vadd.f32 %v321, %v323
    %v325 = vstv %s316
    %v326 = vmul.f32 %v55, %v325
    %v327 = vadd.f32 %v324, %v326
    %v328 = vmul.f32 %v46, %v317
    %v329 = vmul.f32 %v49, %v319
    %v330 = vadd.f32 %v328, %v329
    %v331 = vmul.f32 %v55, %v322
    %v332 = vadd.f32 %v330, %v331
    %v333 = vmul.f32 %v58, %v325
    %v334 = vadd.f32 %v332, %v333
    %v335 = vmax.f32 %v327, %v334
    %v336 = vmul.f32 %v52, %v317
    %v337 = vmul.f32 %v55, %v319
    %v338 = vadd.f32 %v336, %v337
    %v339 = vmul.f32 %v61, %v322
    %v340 = vadd.f32 %v338, %v339
    %v341 = vmul.f32 %v64, %v325
    %v342 = vadd.f32 %v340, %v341
    %v343 = vmax.f32 %v335, %v342
    %v344 = vmul.f32 %v55, %v317
    %v345 = vmul.f32 %v58, %v319
    %v346 = vadd.f32 %v344, %v345
    %v347 = vmul.f32 %v64, %v322
    %v348 = vadd.f32 %v346, %v347
    %v349 = vmul.f32 %v67, %v325
    %v350 = vadd.f32 %v348, %v349
    %v351 = vmax.f32 %v343, %v350
    %s352 = sld [smem:[#allocation4 + $0x1]]
    %v353 = vstv %s352
    %v354 = vadd.f32 %v351, %v353
    %v355 = vmax.f32 %v354, 0.0
    %s356 = scalar_lea.vmem %s3, 1
    %v357 = vld [vmem:[%s356] ss:$8 sm:$0xf]
    %v359 = vlaneseq
    %v360 = vshrl.u32 %v359, 7
    %v361 = vsub.s32 0, %v360
    %v362 = vrot.slane %v357, %v361
    %v363 = vlaneseq
    %v364 = vshrl.u32 %v363, 7
    %v365 = vsub.s32 1, %v364
    %v366 = vrot.slane %v357, %v365
    %v367 = vlaneseq
    %v368 = vshrl.u32 %v367, 7
    %v369 = vsub.s32 2, %v368
    %v370 = vrot.slane %v357, %v369
    %v371 = vlaneseq
    %v372 = vshrl.u32 %v371, 7
    %v373 = vsub.s32 3, %v372
    %v374 = vrot.slane %v357, %v373
    %v375 = vcombine.low %v362, %v366
    %v376 = vcombine.low %v370, %v374
    %v378 = vunpack.c.l.s4 1983009808
    %v379 = vunpack.c.0.s8 %v378
    %v380 = vlaneseq
    %v381 = vshrl.u32 %v380, 7
    %v382 = vsub.s32 %v379, %v381
    %v383 = vrot.slane %v375, %v382
    %v385 = vunpack.c.l.s4 1983009808
    %v386 = vunpack.c.0.s8 %v385
    %v387 = vlaneseq
    %v388 = vshrl.u32 %v387, 7
    %v389 = vsub.s32 %v386, %v388
    %v390 = vrot.slane %v376, %v389
    %v391 = vcombine.low %v383, %v390
    %v393 = vmul.f32 %v355, %v391
    %v395 = vcombine.high %v393, %v393
    %v397 = vunpack.c.l.s4 1983009808
    %v398 = vunpack.c.0.s8 %v397
    %v399 = vlaneseq
    %v400 = vshrl.u32 %v399, 7
    %v401 = vsub.s32 %v398, %v400
    %v402 = vrot.slane %v393, %v401
    %v404 = vunpack.c.l.s4 1983009808
    %v405 = vunpack.c.0.s8 %v404
    %v406 = vlaneseq
    %v407 = vshrl.u32 %v406, 7
    %v408 = vsub.s32 %v405, %v407
    %v409 = vrot.slane %v395, %v408
    %v410 = vcombine.high %v402, %v402
    %v411 = vcombine.high %v409, %v409
    %v416 = vsel %vm170, %v402, 0.0
    %v417 = vsel %vm170, %v410, 0.0
    %v418 = vadd.f32 %v416, %v417
    %v419 = vsel %vm170, %v409, 0.0
    %v420 = vadd.f32 %v418, %v419
    %v421 = vsel %vm176, %v411, 0.0
    %v422 = vadd.f32 %v420, %v421
    %423 = vadd.xlane.f32.xlu0 %v422
    %v424 = vpop.xlane.xlu0 %423
    %s425 = scalar_lea.vmem %s3, 5
    %v426 = vld [vmem:[%s425] ss:$8 sm:$0xf]
    %v428 = vlaneseq
    %v429 = vshrl.u32 %v428, 7
    %v430 = vsub.s32 0, %v429
    %v431 = vrot.slane %v426, %v430
    %v432 = vlaneseq
    %v433 = vshrl.u32 %v432, 7
    %v434 = vsub.s32 1, %v433
    %v435 = vrot.slane %v426, %v434
    %v436 = vlaneseq
    %v437 = vshrl.u32 %v436, 7
    %v438 = vsub.s32 2, %v437
    %v439 = vrot.slane %v426, %v438
    %v440 = vlaneseq
    %v441 = vshrl.u32 %v440, 7
    %v442 = vsub.s32 3, %v441
    %v443 = vrot.slane %v426, %v442
    %v444 = vcombine.low %v431, %v435
    %v445 = vcombine.low %v439, %v443
    %v447 = vunpack.c.l.s4 1983009808
    %v448 = vunpack.c.0.s8 %v447
    %v449 = vlaneseq
    %v450 = vshrl.u32 %v449, 7
    %v451 = vsub.s32 %v448, %v450
    %v452 = vrot.slane %v444, %v451
    %v454 = vunpack.c.l.s4 1983009808
    %v455 = vunpack.c.0.s8 %v454
    %v456 = vlaneseq
    %v457 = vshrl.u32 %v456, 7
    %v458 = vsub.s32 %v455, %v457
    %v459 = vrot.slane %v445, %v458
    %v460 = vcombine.low %v452, %v459
    %v462 = vmul.f32 %v355, %v460
    %v464 = vcombine.high %v462, %v462
    %v466 = vunpack.c.l.s4 1983009808
    %v467 = vunpack.c.0.s8 %v466
    %v468 = vlaneseq
    %v469 = vshrl.u32 %v468, 7
    %v470 = vsub.s32 %v467, %v469
    %v471 = vrot.slane %v462, %v470
    %v473 = vunpack.c.l.s4 1983009808
    %v474 = vunpack.c.0.s8 %v473
    %v475 = vlaneseq
    %v476 = vshrl.u32 %v475, 7
    %v477 = vsub.s32 %v474, %v476
    %v478 = vrot.slane %v464, %v477
    %v479 = vcombine.high %v471, %v471
    %v480 = vcombine.high %v478, %v478
    %v485 = vsel %vm170, %v471, 0.0
    %v486 = vsel %vm170, %v479, 0.0
    %v487 = vadd.f32 %v485, %v486
    %v488 = vsel %vm170, %v478, 0.0
    %v489 = vadd.f32 %v487, %v488
    %v490 = vsel %vm176, %v480, 0.0
    %v491 = vadd.f32 %v489, %v490
    %492 = vadd.xlane.f32.xlu0 %v491
    %v493 = vpop.xlane.xlu0 %492
    %v495 = vcombine.high %v355, %v355
    %v497 = vunpack.c.l.s4 1983009808
    %v498 = vunpack.c.0.s8 %v497
    %v499 = vlaneseq
    %v500 = vshrl.u32 %v499, 7
    %v501 = vsub.s32 %v498, %v500
    %v502 = vrot.slane %v355, %v501
    %v504 = vunpack.c.l.s4 1983009808
    %v505 = vunpack.c.0.s8 %v504
    %v506 = vlaneseq
    %v507 = vshrl.u32 %v506, 7
    %v508 = vsub.s32 %v505, %v507
    %v509 = vrot.slane %v495, %v508
    %v510 = vcombine.high %v502, %v502
    %v511 = vcombine.high %v509, %v509
    %v516 = vsel %vm170, %v502, 0.0
    %v517 = vsel %vm170, %v510, 0.0
    %v518 = vadd.f32 %v516, %v517
    %v519 = vsel %vm170, %v509, 0.0
    %v520 = vadd.f32 %v518, %v519
    %v521 = vsel %vm176, %v511, 0.0
    %v522 = vadd.f32 %v520, %v521
    %523 = vadd.xlane.f32.xlu0 %v522
    %v524 = vpop.xlane.xlu0 %523
    %v525 = vmul.f32 %v355, %v355
    %v527 = vcombine.high %v525, %v525
    %v529 = vunpack.c.l.s4 1983009808
    %v530 = vunpack.c.0.s8 %v529
    %v531 = vlaneseq
    %v532 = vshrl.u32 %v531, 7
    %v533 = vsub.s32 %v530, %v532
    %v534 = vrot.slane %v525, %v533
    %v536 = vunpack.c.l.s4 1983009808
    %v537 = vunpack.c.0.s8 %v536
    %v538 = vlaneseq
    %v539 = vshrl.u32 %v538, 7
    %v540 = vsub.s32 %v537, %v539
    %v541 = vrot.slane %v527, %v540
    %v542 = vcombine.high %v534, %v534
    %v543 = vcombine.high %v541, %v541
    %v548 = vsel %vm170, %v534, 0.0
    %v549 = vsel %vm170, %v542, 0.0
    %v550 = vadd.f32 %v548, %v549
    %v551 = vsel %vm170, %v541, 0.0
    %v552 = vadd.f32 %v550, %v551
    %v553 = vsel %vm176, %v543, 0.0
    %v554 = vadd.f32 %v552, %v553
    %555 = vadd.xlane.f32.xlu0 %v554
    %v556 = vpop.xlane.xlu0 %555
    %s557 = sld [smem:[#allocation2 + $0x8]]
    %s558 = sld [smem:[#allocation2 + $0x9]]
    %s559 = sld [smem:[#allocation2 + $0xa]]
    %s560 = sld [smem:[#allocation2 + $0xb]]
    %v561 = vstv %s557
    %v562 = vmul.f32 %v43, %v561
    %v563 = vstv %s558
    %v564 = vmul.f32 %v46, %v563
    %v565 = vadd.f32 %v562, %v564
    %v566 = vstv %s559
    %v567 = vmul.f32 %v52, %v566
    %v568 = vadd.f32 %v565, %v567
    %v569 = vstv %s560
    %v570 = vmul.f32 %v55, %v569
    %v571 = vadd.f32 %v568, %v570
    %v572 = vmul.f32 %v46, %v561
    %v573 = vmul.f32 %v49, %v563
    %v574 = vadd.f32 %v572, %v573
    %v575 = vmul.f32 %v55, %v566
    %v576 = vadd.f32 %v574, %v575
    %v577 = vmul.f32 %v58, %v569
    %v578 = vadd.f32 %v576, %v577
    %v579 = vmax.f32 %v571, %v578
    %v580 = vmul.f32 %v52, %v561
    %v581 = vmul.f32 %v55, %v563
    %v582 = vadd.f32 %v580, %v581
    %v583 = vmul.f32 %v61, %v566
    %v584 = vadd.f32 %v582, %v583
    %v585 = vmul.f32 %v64, %v569
    %v586 = vadd.f32 %v584, %v585
    %v587 = vmax.f32 %v579, %v586
    %v588 = vmul.f32 %v55, %v561
    %v589 = vmul.f32 %v58, %v563
    %v590 = vadd.f32 %v588, %v589
    %v591 = vmul.f32 %v64, %v566
    %v592 = vadd.f32 %v590, %v591
    %v593 = vmul.f32 %v67, %v569
    %v594 = vadd.f32 %v592, %v593
    %v595 = vmax.f32 %v587, %v594
    %s596 = sld [smem:[#allocation4 + $0x2]]
    %v597 = vstv %s596
    %v598 = vadd.f32 %v595, %v597
    %v599 = vmax.f32 %v598, 0.0
    %s600 = scalar_lea.vmem %s3, 2
    %v601 = vld [vmem:[%s600] ss:$8 sm:$0xf]
    %v603 = vlaneseq
    %v604 = vshrl.u32 %v603, 7
    %v605 = vsub.s32 0, %v604
    %v606 = vrot.slane %v601, %v605
    %v607 = vlaneseq
    %v608 = vshrl.u32 %v607, 7
    %v609 = vsub.s32 1, %v608
    %v610 = vrot.slane %v601, %v609
    %v611 = vlaneseq
    %v612 = vshrl.u32 %v611, 7
    %v613 = vsub.s32 2, %v612
    %v614 = vrot.slane %v601, %v613
    %v615 = vlaneseq
    %v616 = vshrl.u32 %v615, 7
    %v617 = vsub.s32 3, %v616
    %v618 = vrot.slane %v601, %v617
    %v619 = vcombine.low %v606, %v610
    %v620 = vcombine.low %v614, %v618
    %v622 = vunpack.c.l.s4 1983009808
    %v623 = vunpack.c.0.s8 %v622
    %v624 = vlaneseq
    %v625 = vshrl.u32 %v624, 7
    %v626 = vsub.s32 %v623, %v625
    %v627 = vrot.slane %v619, %v626
    %v629 = vunpack.c.l.s4 1983009808
    %v630 = vunpack.c.0.s8 %v629
    %v631 = vlaneseq
    %v632 = vshrl.u32 %v631, 7
    %v633 = vsub.s32 %v630, %v632
    %v634 = vrot.slane %v620, %v633
    %v635 = vcombine.low %v627, %v634
    %v637 = vmul.f32 %v599, %v635
    %v639 = vcombine.high %v637, %v637
    %v641 = vunpack.c.l.s4 1983009808
    %v642 = vunpack.c.0.s8 %v641
    %v643 = vlaneseq
    %v644 = vshrl.u32 %v643, 7
    %v645 = vsub.s32 %v642, %v644
    %v646 = vrot.slane %v637, %v645
    %v648 = vunpack.c.l.s4 1983009808
    %v649 = vunpack.c.0.s8 %v648
    %v650 = vlaneseq
    %v651 = vshrl.u32 %v650, 7
    %v652 = vsub.s32 %v649, %v651
    %v653 = vrot.slane %v639, %v652
    %v654 = vcombine.high %v646, %v646
    %v655 = vcombine.high %v653, %v653
    %v660 = vsel %vm170, %v646, 0.0
    %v661 = vsel %vm170, %v654, 0.0
    %v662 = vadd.f32 %v660, %v661
    %v663 = vsel %vm170, %v653, 0.0
    %v664 = vadd.f32 %v662, %v663
    %v665 = vsel %vm176, %v655, 0.0
    %v666 = vadd.f32 %v664, %v665
    %667 = vadd.xlane.f32.xlu0 %v666
    %v668 = vpop.xlane.xlu0 %667
    %s669 = scalar_lea.vmem %s3, 6
    %v670 = vld [vmem:[%s669] ss:$8 sm:$0xf]
    %v672 = vlaneseq
    %v673 = vshrl.u32 %v672, 7
    %v674 = vsub.s32 0, %v673
    %v675 = vrot.slane %v670, %v674
    %v676 = vlaneseq
    %v677 = vshrl.u32 %v676, 7
    %v678 = vsub.s32 1, %v677
    %v679 = vrot.slane %v670, %v678
    %v680 = vlaneseq
    %v681 = vshrl.u32 %v680, 7
    %v682 = vsub.s32 2, %v681
    %v683 = vrot.slane %v670, %v682
    %v684 = vlaneseq
    %v685 = vshrl.u32 %v684, 7
    %v686 = vsub.s32 3, %v685
    %v687 = vrot.slane %v670, %v686
    %v688 = vcombine.low %v675, %v679
    %v689 = vcombine.low %v683, %v687
    %v691 = vunpack.c.l.s4 1983009808
    %v692 = vunpack.c.0.s8 %v691
    %v693 = vlaneseq
    %v694 = vshrl.u32 %v693, 7
    %v695 = vsub.s32 %v692, %v694
    %v696 = vrot.slane %v688, %v695
    %v698 = vunpack.c.l.s4 1983009808
    %v699 = vunpack.c.0.s8 %v698
    %v700 = vlaneseq
    %v701 = vshrl.u32 %v700, 7
    %v702 = vsub.s32 %v699, %v701
    %v703 = vrot.slane %v689, %v702
    %v704 = vcombine.low %v696, %v703
    %v706 = vmul.f32 %v599, %v704
    %v708 = vcombine.high %v706, %v706
    %v710 = vunpack.c.l.s4 1983009808
    %v711 = vunpack.c.0.s8 %v710
    %v712 = vlaneseq
    %v713 = vshrl.u32 %v712, 7
    %v714 = vsub.s32 %v711, %v713
    %v715 = vrot.slane %v706, %v714
    %v717 = vunpack.c.l.s4 1983009808
    %v718 = vunpack.c.0.s8 %v717
    %v719 = vlaneseq
    %v720 = vshrl.u32 %v719, 7
    %v721 = vsub.s32 %v718, %v720
    %v722 = vrot.slane %v708, %v721
    %v723 = vcombine.high %v715, %v715
    %v724 = vcombine.high %v722, %v722
    %v729 = vsel %vm170, %v715, 0.0
    %v730 = vsel %vm170, %v723, 0.0
    %v731 = vadd.f32 %v729, %v730
    %v732 = vsel %vm170, %v722, 0.0
    %v733 = vadd.f32 %v731, %v732
    %v734 = vsel %vm176, %v724, 0.0
    %v735 = vadd.f32 %v733, %v734
    %736 = vadd.xlane.f32.xlu0 %v735
    %v737 = vpop.xlane.xlu0 %736
    %v739 = vcombine.high %v599, %v599
    %v741 = vunpack.c.l.s4 1983009808
    %v742 = vunpack.c.0.s8 %v741
    %v743 = vlaneseq
    %v744 = vshrl.u32 %v743, 7
    %v745 = vsub.s32 %v742, %v744
    %v746 = vrot.slane %v599, %v745
    %v748 = vunpack.c.l.s4 1983009808
    %v749 = vunpack.c.0.s8 %v748
    %v750 = vlaneseq
    %v751 = vshrl.u32 %v750, 7
    %v752 = vsub.s32 %v749, %v751
    %v753 = vrot.slane %v739, %v752
    %v754 = vcombine.high %v746, %v746
    %v755 = vcombine.high %v753, %v753
    %v760 = vsel %vm170, %v746, 0.0
    %v761 = vsel %vm170, %v754, 0.0
    %v762 = vadd.f32 %v760, %v761
    %v763 = vsel %vm170, %v753, 0.0
    %v764 = vadd.f32 %v762, %v763
    %v765 = vsel %vm176, %v755, 0.0
    %v766 = vadd.f32 %v764, %v765
    %767 = vadd.xlane.f32.xlu0 %v766
    %v768 = vpop.xlane.xlu0 %767
    %v769 = vmul.f32 %v599, %v599
    %v771 = vcombine.high %v769, %v769
    %v773 = vunpack.c.l.s4 1983009808
    %v774 = vunpack.c.0.s8 %v773
    %v775 = vlaneseq
    %v776 = vshrl.u32 %v775, 7
    %v777 = vsub.s32 %v774, %v776
    %v778 = vrot.slane %v769, %v777
    %v780 = vunpack.c.l.s4 1983009808
    %v781 = vunpack.c.0.s8 %v780
    %v782 = vlaneseq
    %v783 = vshrl.u32 %v782, 7
    %v784 = vsub.s32 %v781, %v783
    %v785 = vrot.slane %v771, %v784
    %v786 = vcombine.high %v778, %v778
    %v787 = vcombine.high %v785, %v785
    %v792 = vsel %vm170, %v778, 0.0
    %v793 = vsel %vm170, %v786, 0.0
    %v794 = vadd.f32 %v792, %v793
    %v795 = vsel %vm170, %v785, 0.0
    %v796 = vadd.f32 %v794, %v795
    %v797 = vsel %vm176, %v787, 0.0
    %v798 = vadd.f32 %v796, %v797
    %799 = vadd.xlane.f32.xlu0 %v798
    %v800 = vpop.xlane.xlu0 %799
    %s801 = sld [smem:[#allocation2 + $0xc]]
    %s802 = sld [smem:[#allocation2 + $0xd]]
    %s803 = sld [smem:[#allocation2 + $0xe]]
    %s804 = sld [smem:[#allocation2 + $0xf]]
    %v805 = vstv %s801
    %v806 = vmul.f32 %v43, %v805
    %v807 = vstv %s802
    %v808 = vmul.f32 %v46, %v807
    %v809 = vadd.f32 %v806, %v808
    %v810 = vstv %s803
    %v811 = vmul.f32 %v52, %v810
    %v812 = vadd.f32 %v809, %v811
    %v813 = vstv %s804
    %v814 = vmul.f32 %v55, %v813
    %v815 = vadd.f32 %v812, %v814
    %v816 = vmul.f32 %v46, %v805
    %v817 = vmul.f32 %v49, %v807
    %v818 = vadd.f32 %v816, %v817
    %v819 = vmul.f32 %v55, %v810
    %v820 = vadd.f32 %v818, %v819
    %v821 = vmul.f32 %v58, %v813
    %v822 = vadd.f32 %v820, %v821
    %v823 = vmax.f32 %v815, %v822
    %v824 = vmul.f32 %v52, %v805
    %v825 = vmul.f32 %v55, %v807
    %v826 = vadd.f32 %v824, %v825
    %v827 = vmul.f32 %v61, %v810
    %v828 = vadd.f32 %v826, %v827
    %v829 = vmul.f32 %v64, %v813
    %v830 = vadd.f32 %v828, %v829
    %v831 = vmax.f32 %v823, %v830
    %v832 = vmul.f32 %v55, %v805
    %v833 = vmul.f32 %v58, %v807
    %v834 = vadd.f32 %v832, %v833
    %v835 = vmul.f32 %v64, %v810
    %v836 = vadd.f32 %v834, %v835
    %v837 = vmul.f32 %v67, %v813
    %v838 = vadd.f32 %v836, %v837
    %v839 = vmax.f32 %v831, %v838
    %s840 = sld [smem:[#allocation4 + $0x3]]
    %v841 = vstv %s840
    %v842 = vadd.f32 %v839, %v841
    %v843 = vmax.f32 %v842, 0.0
    %s844 = scalar_lea.vmem %s3, 3
    %v845 = vld [vmem:[%s844] ss:$8 sm:$0xf]
    %v847 = vlaneseq
    %v848 = vshrl.u32 %v847, 7
    %v849 = vsub.s32 0, %v848
    %v850 = vrot.slane %v845, %v849
    %v851 = vlaneseq
    %v852 = vshrl.u32 %v851, 7
    %v853 = vsub.s32 1, %v852
    %v854 = vrot.slane %v845, %v853
    %v855 = vlaneseq
    %v856 = vshrl.u32 %v855, 7
    %v857 = vsub.s32 2, %v856
    %v858 = vrot.slane %v845, %v857
    %v859 = vlaneseq
    %v860 = vshrl.u32 %v859, 7
    %v861 = vsub.s32 3, %v860
    %v862 = vrot.slane %v845, %v861
    %v863 = vcombine.low %v850, %v854
    %v864 = vcombine.low %v858, %v862
    %v866 = vunpack.c.l.s4 1983009808
    %v867 = vunpack.c.0.s8 %v866
    %v868 = vlaneseq
    %v869 = vshrl.u32 %v868, 7
    %v870 = vsub.s32 %v867, %v869
    %v871 = vrot.slane %v863, %v870
    %v873 = vunpack.c.l.s4 1983009808
    %v874 = vunpack.c.0.s8 %v873
    %v875 = vlaneseq
    %v876 = vshrl.u32 %v875, 7
    %v877 = vsub.s32 %v874, %v876
    %v878 = vrot.slane %v864, %v877
    %v879 = vcombine.low %v871, %v878
    %v881 = vmul.f32 %v843, %v879
    %v883 = vcombine.high %v881, %v881
    %v885 = vunpack.c.l.s4 1983009808
    %v886 = vunpack.c.0.s8 %v885
    %v887 = vlaneseq
    %v888 = vshrl.u32 %v887, 7
    %v889 = vsub.s32 %v886, %v888
    %v890 = vrot.slane %v881, %v889
    %v892 = vunpack.c.l.s4 1983009808
    %v893 = vunpack.c.0.s8 %v892
    %v894 = vlaneseq
    %v895 = vshrl.u32 %v894, 7
    %v896 = vsub.s32 %v893, %v895
    %v897 = vrot.slane %v883, %v896
    %v898 = vcombine.high %v890, %v890
    %v899 = vcombine.high %v897, %v897
    %v904 = vsel %vm170, %v890, 0.0
    %v905 = vsel %vm170, %v898, 0.0
    %v906 = vadd.f32 %v904, %v905
    %v907 = vsel %vm170, %v897, 0.0
    %v908 = vadd.f32 %v906, %v907
    %v909 = vsel %vm176, %v899, 0.0
    %v910 = vadd.f32 %v908, %v909
    %911 = vadd.xlane.f32.xlu0 %v910
    %v912 = vpop.xlane.xlu0 %911
    %s913 = scalar_lea.vmem %s3, 7
    %v914 = vld [vmem:[%s913] ss:$8 sm:$0xf]
    %v916 = vlaneseq
    %v917 = vshrl.u32 %v916, 7
    %v918 = vsub.s32 0, %v917
    %v919 = vrot.slane %v914, %v918
    %v920 = vlaneseq
    %v921 = vshrl.u32 %v920, 7
    %v922 = vsub.s32 1, %v921
    %v923 = vrot.slane %v914, %v922
    %v924 = vlaneseq
    %v925 = vshrl.u32 %v924, 7
    %v926 = vsub.s32 2, %v925
    %v927 = vrot.slane %v914, %v926
    %v928 = vlaneseq
    %v929 = vshrl.u32 %v928, 7
    %v930 = vsub.s32 3, %v929
    %v931 = vrot.slane %v914, %v930
    %v932 = vcombine.low %v919, %v923
    %v933 = vcombine.low %v927, %v931
    %v935 = vunpack.c.l.s4 1983009808
    %v936 = vunpack.c.0.s8 %v935
    %v937 = vlaneseq
    %v938 = vshrl.u32 %v937, 7
    %v939 = vsub.s32 %v936, %v938
    %v940 = vrot.slane %v932, %v939
    %v942 = vunpack.c.l.s4 1983009808
    %v943 = vunpack.c.0.s8 %v942
    %v944 = vlaneseq
    %v945 = vshrl.u32 %v944, 7
    %v946 = vsub.s32 %v943, %v945
    %v947 = vrot.slane %v933, %v946
    %v948 = vcombine.low %v940, %v947
    %v950 = vmul.f32 %v843, %v948
    %v952 = vcombine.high %v950, %v950
    %v954 = vunpack.c.l.s4 1983009808
    %v955 = vunpack.c.0.s8 %v954
    %v956 = vlaneseq
    %v957 = vshrl.u32 %v956, 7
    %v958 = vsub.s32 %v955, %v957
    %v959 = vrot.slane %v950, %v958
    %v961 = vunpack.c.l.s4 1983009808
    %v962 = vunpack.c.0.s8 %v961
    %v963 = vlaneseq
    %v964 = vshrl.u32 %v963, 7
    %v965 = vsub.s32 %v962, %v964
    %v966 = vrot.slane %v952, %v965
    %v967 = vcombine.high %v959, %v959
    %v968 = vcombine.high %v966, %v966
    %v973 = vsel %vm170, %v959, 0.0
    %v974 = vsel %vm170, %v967, 0.0
    %v975 = vadd.f32 %v973, %v974
    %v976 = vsel %vm170, %v966, 0.0
    %v977 = vadd.f32 %v975, %v976
    %v978 = vsel %vm176, %v968, 0.0
    %v979 = vadd.f32 %v977, %v978
    %980 = vadd.xlane.f32.xlu0 %v979
    %v981 = vpop.xlane.xlu0 %980
    %v983 = vcombine.high %v843, %v843
    %v985 = vunpack.c.l.s4 1983009808
    %v986 = vunpack.c.0.s8 %v985
    %v987 = vlaneseq
    %v988 = vshrl.u32 %v987, 7
    %v989 = vsub.s32 %v986, %v988
    %v990 = vrot.slane %v843, %v989
    %v992 = vunpack.c.l.s4 1983009808
    %v993 = vunpack.c.0.s8 %v992
    %v994 = vlaneseq
    %v995 = vshrl.u32 %v994, 7
    %v996 = vsub.s32 %v993, %v995
    %v997 = vrot.slane %v983, %v996
    %v998 = vcombine.high %v990, %v990
    %v999 = vcombine.high %v997, %v997
    %v1004 = vsel %vm170, %v990, 0.0
    %v1005 = vsel %vm170, %v998, 0.0
    %v1006 = vadd.f32 %v1004, %v1005
    %v1007 = vsel %vm170, %v997, 0.0
    %v1008 = vadd.f32 %v1006, %v1007
    %v1009 = vsel %vm176, %v999, 0.0
    %v1010 = vadd.f32 %v1008, %v1009
    %1011 = vadd.xlane.f32.xlu0 %v1010
    %v1012 = vpop.xlane.xlu0 %1011
    %v1013 = vmul.f32 %v843, %v843
    %v1015 = vcombine.high %v1013, %v1013
    %v1017 = vunpack.c.l.s4 1983009808
    %v1018 = vunpack.c.0.s8 %v1017
    %v1019 = vlaneseq
    %v1020 = vshrl.u32 %v1019, 7
    %v1021 = vsub.s32 %v1018, %v1020
    %v1022 = vrot.slane %v1013, %v1021
    %v1024 = vunpack.c.l.s4 1983009808
    %v1025 = vunpack.c.0.s8 %v1024
    %v1026 = vlaneseq
    %v1027 = vshrl.u32 %v1026, 7
    %v1028 = vsub.s32 %v1025, %v1027
    %v1029 = vrot.slane %v1015, %v1028
    %v1030 = vcombine.high %v1022, %v1022
    %v1031 = vcombine.high %v1029, %v1029
    %v1036 = vsel %vm170, %v1022, 0.0
    %v1037 = vsel %vm170, %v1030, 0.0
    %v1038 = vadd.f32 %v1036, %v1037
    %v1039 = vsel %vm170, %v1029, 0.0
    %v1040 = vadd.f32 %v1038, %v1039
    %v1041 = vsel %vm176, %v1031, 0.0
    %v1042 = vadd.f32 %v1040, %v1041
    %1043 = vadd.xlane.f32.xlu0 %v1042
    %v1044 = vpop.xlane.xlu0 %1043
    %vm1045 = vcmask 7168
    %v1046 = vsel %vm1045, %v180, %v424
    %vm1047 = vcmask 15360
    %v1048 = vsel %vm1047, %v1046, %v668
    %vm1049 = vcmask 23552
    %v1050 = vsel %vm1049, %v1048, %v912
    %vm1051 = vcmask 31744
    %v1052 = vsel %vm1051, %v1050, %v249
    %vm1053 = vcmask 39936
    %v1054 = vsel %vm1053, %v1052, %v493
    %vm1055 = vcmask 48128
    %v1056 = vsel %vm1055, %v1054, %v737
    %vm1057 = vcmask 56320
    %v1058 = vsel %vm1057, %v1056, %v981
    %vm1059 = vcmask 64512
    %v1060 = vsel %vm1059, %v1058, %v280
    %vm1061 = vcmask 72704
    %v1062 = vsel %vm1061, %v1060, %v524
    %vm1063 = vcmask 80896
    %v1064 = vsel %vm1063, %v1062, %v768
    %vm1065 = vcmask 89088
    %v1066 = vsel %vm1065, %v1064, %v1012
    %vm1067 = vcmask 97280
    %v1068 = vsel %vm1067, %v1066, %v312
    %vm1069 = vcmask 105472
    %v1070 = vsel %vm1069, %v1068, %v556
    %vm1071 = vcmask 113664
    %v1072 = vsel %vm1071, %v1070, %v800
    %vm1073 = vcmask 121856
    %v1074 = vsel %vm1073, %v1072, %v1044
    %1075 = vst.msk [vmem:[%s4] sm:$0x3] %vm176, %v1074
    // Predicated region
    $region26: #{ising_forward.1} parent=1 // pred_check
      _
    $region27: #{ising_forward.1} parent=1 // pred_check_branch
      %1077 = sbr.rel (0) target = $region29
    $region28: #{ising_forward.1} parent=1 // pred_region
      _
    $region29: #{ising_forward.1} parent=1 // pred_fallthru
      _
    // Predicated region
    $region30: #{ising_forward.1} parent=1 // pred_check
      _
    $region31: #{ising_forward.1} parent=1 // pred_check_branch
      %1079 = sbr.rel (0) target = $region33
    $region32: #{ising_forward.1} parent=1 // pred_region
      _
    $region33: #{ising_forward.1} parent=1 // pred_fallthru
      _
    %1080 = vsyncpa [#allocation3], 1
    %1081 = vsyncpa [#allocation5], 1

</llo_original>
